<compile_context>
chip_gen: v7x
topology: tpu7x:2x2x1
jax: 0.10.0
libtpu: 0.0.40
codegen_flags: <defaults>
</compile_context>

<pallas_src>
import functools
import numpy as np
import jax
import jax.numpy as jnp
from jax import lax
from jax.experimental import pallas as pl
from jax.experimental.pallas import tpu as pltpu


def _contiguous_runs(src_idx):
    """Split a list of source row indices into maximal (dst0, src0, n) runs."""
    runs = []
    start = 0
    for k in range(1, len(src_idx) + 1):
        if k == len(src_idx) or src_idx[k] != src_idx[k - 1] + 1:
            runs.append((start, int(src_idx[start]), k - start))
            start = k
    return tuple(runs)


def _round_up(v, m):
    return ((v + m - 1) // m) * m


def _vmem_capacity_bytes():
    """Physical VMEM per TensorCore; conservative fallback if unqueryable."""
    try:
        cap = getattr(pltpu.get_tpu_info(), "vmem_capacity_bytes", None)
        if cap:
            return int(cap)
    except Exception:
        pass
    return 64 * 1024 * 1024  # v7x per-TC size; safe lower bound for all chips


def _pick_c_tile(C, track_size, per_lane_bytes, budget_bytes, c_tile):
    """Largest channel tile that keeps tracks tile-aligned and fits the VMEM budget."""
    def valid(ct):
        if ct == C:
            return True
        return (C % ct == 0) and (ct % 128 == 0) and (C % track_size == 0) \
            and (ct % track_size == 0)

    def fits(ct):
        return per_lane_bytes * ct <= budget_bytes

    if c_tile is not None:
        c_tile = int(c_tile)
        assert valid(c_tile), \
            "c_tile must divide C and be a multiple of 128 and of track_size (or equal C)"
        return c_tile

    cands = sorted({C, *[c for c in (1024, 512, 256, 128) if c <= C]}, reverse=True)
    for ct in cands:
        if valid(ct) and fits(ct):
            return ct
    for ct in reversed(cands):          # nothing fits the budget: smallest valid
        if valid(ct):
            return ct
    return C


def _chord_rotate_kernel(shift_ref, rows_ref, x_ref, o_ref, ext_ref, *,
                         ext_segments, local_bands, tracks_per_tile, max_len,
                         c_tile):
    # shift_ref: SMEM (n_ctiles*tracks_per_tile,) int32 - per-track effective shifts
    # rows_ref:  SMEM (n_ctiles,) int32                 - per-tile ext depth needed
    # x_ref:     VMEM (R, c_tile)        current batch / channel tile of the input
    # o_ref:     VMEM (max_len, c_tile)  current batch / channel tile of the output
    # ext_ref:   VMEM (ext_rows, c_tile) scratch: circular frame + shift headroom
    b = pl.program_id(0)
    ct = pl.program_id(1)
    rows_needed = rows_ref[ct]

    # ---- Stage 1: ext[k, :] = x[(k % padded_len) % lengths[b], :] ------------
    # Static full-lane-width row-range copies (bounds precomputed on the host);
    # segments that start at/after this tile's needed depth are skipped.
    # TODO(synk): for very large B, replace the per-batch static unroll with a
    # lax.fori_loop over an SMEM table of fixed-size (dst, src) chunks.
    for bb, segs in enumerate(ext_segments):
        def _build(segs=segs):
            for d0, s0, n in segs:
                def _copy(d0=d0, s0=s0, n=n):
                    ext_ref[d0:d0 + n, :] = x_ref[s0:s0 + n, :]
                if d0 == 0:
                    _copy()                      # first segment is always needed
                else:
                    pl.when(d0 < rows_needed)(_copy)
        pl.when(b == bb)(_build)

    # ---- Stage 2: merge only this tile's rolled track views -----------------
    # Each track's rolled view is ONE contiguous dynamic-start slice of ext;
    # bands are disjoint and increasing, so a single lower-bound lane mask per
    # track suffices (last writer wins).  The whole (max_len, c_tile) tile is
    # then written with one unmasked lane-dense store.
    base = ct * tracks_per_tile
    acc = ext_ref[pl.ds(shift_ref[base], max_len), :]
    for t_local in range(1, tracks_per_tile):
        c0, _ = local_bands[t_local]
        rolled = ext_ref[pl.ds(shift_ref[base + t_local], max_len), :]
        mask = lax.broadcasted_iota(jnp.int32, (1, c_tile), 1) >= c0
        acc = jnp.where(mask, rolled, acc)
    o_ref[...] = acc


def rotate_chord_circular_pad(x, lengths, track_size, *, c_tile=None):
    """Pallas TPU port of RotateChordCircularPad.forward.

    x: (B, N, C); lengths: python list of static ints; track_size: int.
    Returns (B, max(lengths), C).
    Supported-shape restriction (guaranteed by the module's bucket sampling):
    3 * min(lengths) >= max(lengths).
    """
    B, N, C = x.shape
    lengths = [int(l) for l in lengths]
    assert len(lengths) == B and max(lengths) <= N and min(lengths) >= 1
    padded_len = 3 * min(lengths)
    max_len = max(lengths)
    assert padded_len >= max_len, "requires 3*min(lengths) >= max(lengths)"

    itemsize = jnp.dtype(x.dtype).itemsize
    pack = max(8, 32 // itemsize)          # sublane packing: f32->8, bf16->16, int8->32

    # Channel split (mirrors torch.split: last track may be smaller).
    track_bounds = [(c0, min(c0 + track_size, C)) for c0 in range(0, C, track_size)]
    n_tracks = len(track_bounds)
    shifts = [0] + [2 ** (i - 1) for i in range(1, n_tracks)]
    eff_shifts = [s % padded_len for s in shifts]

    # Extended circular frame: ext[k] = x[b, (k % padded_len) % lengths[b]] for
    # k in [0, rows_needed), so every track's roll is one contiguous slice
    # ext[s_eff : s_eff + max_len].
    rows_needed = max(eff_shifts) + max_len
    ext_rows = max(pack, _round_up(rows_needed, pack))
    ext_segments = tuple(
        _contiguous_runs([(k % padded_len) % lengths[b] for k in range(rows_needed)])
        for b in range(B))

    # Input block rows: Stage 1 only reads rows < lengths[b] <= max_len.
    R = min(N, _round_up(max_len, pack))

    # Channel tile sized from the chip's VMEM (in/out double-buffered + scratch).
    vmem_cap = _vmem_capacity_bytes()
    per_lane_bytes = itemsize * (2 * R + 2 * max_len + ext_rows)
    c_tile = _pick_c_tile(C, track_size, per_lane_bytes,
                          vmem_cap - 16 * 1024 * 1024, c_tile)
    n_ctiles = C // c_tile

    # Per-tile track plan (SMEM scalar-prefetch tables).
    if c_tile == C:
        tile_tracks = [list(range(n_tracks))]
        local_bands = tuple(track_bounds)
        tracks_per_tile = n_tracks
    else:
        tracks_per_tile = c_tile // track_size
        tile_tracks = [list(range(t0 * tracks_per_tile, (t0 + 1) * tracks_per_tile))
                       for t0 in range(n_ctiles)]
        local_bands = tuple((t * track_size, (t + 1) * track_size)
                            for t in range(tracks_per_tile))

    shift_tbl = np.zeros((n_ctiles * tracks_per_tile,), dtype=np.int32)
    rows_tbl = np.zeros((n_ctiles,), dtype=np.int32)
    for tno, tids in enumerate(tile_tracks):
        tile_shifts = [eff_shifts[t] for t in tids]
        shift_tbl[tno * tracks_per_tile:(tno + 1) * tracks_per_tile] = tile_shifts
        rows_tbl[tno] = max(tile_shifts) + max_len

    kernel = functools.partial(
        _chord_rotate_kernel,
        ext_segments=ext_segments, local_bands=local_bands,
        tracks_per_tile=tracks_per_tile, max_len=max_len, c_tile=c_tile)

    per_step_bytes = per_lane_bytes * c_tile
    vmem_limit = int(min(vmem_cap - 8 * 1024 * 1024,
                         max(32 * 1024 * 1024, per_step_bytes + 4 * 1024 * 1024)))

    # TODO(synk): on v7x with B * n_ctiles < 2, add a row-tile grid axis over
    # max_len so both TensorCores get parallel work.
    return pl.pallas_call(
        kernel,
        out_shape=jax.ShapeDtypeStruct((B, max_len, C), x.dtype),
        grid_spec=pltpu.PrefetchScalarGridSpec(
            num_scalar_prefetch=2,
            grid=(B, n_ctiles),
            in_specs=[pl.BlockSpec((None, R, c_tile), lambda b, c, *_: (b, 0, c))],
            out_specs=pl.BlockSpec((None, max_len, c_tile), lambda b, c, *_: (b, 0, c)),
            scratch_shapes=[pltpu.VMEM((ext_rows, c_tile), x.dtype)],
        ),
        compiler_params=pltpu.CompilerParams(
            dimension_semantics=("parallel", "parallel"),
            vmem_limit_bytes=vmem_limit),
    )(jnp.asarray(shift_tbl), jnp.asarray(rows_tbl), x)


def _reference(x, lengths, track_size):
    """NumPy mirror of the PyTorch forward (for correctness check)."""
    x = np.asarray(x)
    B, N, C = x.shape
    padded_len = 3 * min(lengths)
    max_len = max(lengths)
    xs = []
    for b in range(B):
        xi = x[b, :lengths[b], :]
        xs.append(np.concatenate([xi, xi, xi], axis=0)[:padded_len, :])
    xp = np.stack(xs)
    tracks, c0, i = [], 0, 0
    while c0 < C:
        c1 = min(c0 + track_size, C)
        yt = xp[:, :, c0:c1]
        if i > 0:
            yt = np.roll(yt, shift=-(2 ** (i - 1)), axis=1)
        tracks.append(yt)
        c0, i = c1, i + 1
    return np.concatenate(tracks, axis=-1)[:, :max_len, :]


if __name__ == "__main__":
    key = jax.random.PRNGKey(0)
    B, N, C = 2, 16, 256
    track_size = 32
    lengths = [16, 12]            # 3*min(lengths)=36 >= max(lengths)=16
    x = jax.random.normal(key, (B, N, C), dtype=jnp.float32)

    ref = _reference(np.asarray(x), lengths, track_size)

    # Multi-channel-tile path (exercises per-tile shift table + Stage-1 skip).
    out_tiled = rotate_chord_circular_pad(x, lengths, track_size, c_tile=128)
    out_tiled = jax.block_until_ready(out_tiled)
    assert out_tiled.shape == ref.shape, (out_tiled.shape, ref.shape)
    np.testing.assert_array_equal(np.asarray(out_tiled), ref)

    # Default path (auto c_tile; here a single full-C tile).
    out_full = rotate_chord_circular_pad(x, lengths, track_size)
    out_full = jax.block_until_ready(out_full)
    np.testing.assert_array_equal(np.asarray(out_full), ref)

    print("KERNEL_OK")
</pallas_src>

<mosaic_0001>
module attributes {stable_mosaic.version = 11 : i64} {
  func.func @_chord_rotate_kernel(%arg0: i32, %arg1: i32, %arg2: memref<8xi32, #tpu.memory_space<smem>>, %arg3: memref<2xi32, #tpu.memory_space<smem>>, %arg4: memref<1x16x128xf32, #tpu.memory_space<vmem>>, %arg5: memref<1x16x128xf32, #tpu.memory_space<vmem>>, %arg6: memref<48x128xf32, #tpu.memory_space<vmem>>) attributes {dimension_semantics = [#tpu.dimension_semantics<parallel>, #tpu.dimension_semantics<parallel>], iteration_bounds = array<i64: 2, 2>, scalar_prefetch = 2 : i64, scratch_operands = 1 : i64, tpu.core_type = #tpu.core_type<tc>, window_params = [{transform_indices = @transform_0, window_bounds = array<i64: 1, 16, 128>}, {transform_indices = @transform_1, window_bounds = array<i64: 1, 16, 128>}]} {
    %0 = arith.index_cast %arg1 : i32 to index
    %1 = memref.load %arg3[%0] : memref<2xi32, #tpu.memory_space<smem>>
    %c0_i32 = arith.constant 0 : i32
    %2 = arith.cmpi eq, %arg0, %c0_i32 : i32
    %3 = arith.extui %2 : i1 to i32
    %c0_i32_0 = arith.constant 0 : i32
    %4 = arith.cmpi ne, %3, %c0_i32_0 : i32
    scf.if %4 {
      %c0_9 = arith.constant 0 : index
      %c0_10 = arith.constant 0 : index
      %c0_11 = arith.constant 0 : index
      %49 = vector.load %arg4[%c0_9, %c0_10, %c0_11] : memref<1x16x128xf32, #tpu.memory_space<vmem>>, vector<1x16x128xf32>
      %50 = vector.shape_cast %49 : vector<1x16x128xf32> to vector<16x128xf32>
      %c0_12 = arith.constant 0 : index
      %c0_13 = arith.constant 0 : index
      %51 = vector.load %arg6[%c0_12, %c0_13] : memref<48x128xf32, #tpu.memory_space<vmem>>, vector<16x128xf32>
      tpu.vector_store %arg6[%c0_12, %c0_13], %50 {strides = array<i32>} : memref<48x128xf32, #tpu.memory_space<vmem>>, vector<16x128xf32>,
      %c16_i32 = arith.constant 16 : i32
      %52 = arith.cmpi sgt, %1, %c16_i32 : i32
      %53 = arith.extui %52 : i1 to i32
      %c0_i32_14 = arith.constant 0 : i32
      %54 = arith.cmpi ne, %53, %c0_i32_14 : i32
      scf.if %54 {
        %c0_18 = arith.constant 0 : index
        %c0_19 = arith.constant 0 : index
        %c0_20 = arith.constant 0 : index
        %61 = vector.load %arg4[%c0_18, %c0_19, %c0_20] : memref<1x16x128xf32, #tpu.memory_space<vmem>>, vector<1x16x128xf32>
        %62 = vector.shape_cast %61 : vector<1x16x128xf32> to vector<16x128xf32>
        %c16 = arith.constant 16 : index
        %c0_21 = arith.constant 0 : index
        %63 = vector.load %arg6[%c16, %c0_21] : memref<48x128xf32, #tpu.memory_space<vmem>>, vector<16x128xf32>
        tpu.vector_store %arg6[%c16, %c0_21], %62 {strides = array<i32>} : memref<48x128xf32, #tpu.memory_space<vmem>>, vector<16x128xf32>,
      } else {
      }
      %c32_i32_15 = arith.constant 32 : i32
      %55 = arith.cmpi sgt, %1, %c32_i32_15 : i32
      %56 = arith.extui %55 : i1 to i32
      %c0_i32_16 = arith.constant 0 : i32
      %57 = arith.cmpi ne, %56, %c0_i32_16 : i32
      scf.if %57 {
        %c0_18 = arith.constant 0 : index
        %c0_19 = arith.constant 0 : index
        %c0_20 = arith.constant 0 : index
        %61 = vector.load %arg4[%c0_18, %c0_19, %c0_20] : memref<1x16x128xf32, #tpu.memory_space<vmem>>, vector<1x4x128xf32>
        %62 = vector.shape_cast %61 : vector<1x4x128xf32> to vector<4x128xf32>
        %c32 = arith.constant 32 : index
        %c0_21 = arith.constant 0 : index
        %63 = vector.load %arg6[%c32, %c0_21] : memref<48x128xf32, #tpu.memory_space<vmem>>, vector<4x128xf32>
        tpu.vector_store %arg6[%c32, %c0_21], %62 {strides = array<i32>} : memref<48x128xf32, #tpu.memory_space<vmem>>, vector<4x128xf32>,
      } else {
      }
      %c36_i32 = arith.constant 36 : i32
      %58 = arith.cmpi sgt, %1, %c36_i32 : i32
      %59 = arith.extui %58 : i1 to i32
      %c0_i32_17 = arith.constant 0 : i32
      %60 = arith.cmpi ne, %59, %c0_i32_17 : i32
      scf.if %60 {
        %c0_18 = arith.constant 0 : index
        %c0_19 = arith.constant 0 : index
        %c0_20 = arith.constant 0 : index
        %61 = vector.load %arg4[%c0_18, %c0_19, %c0_20] : memref<1x16x128xf32, #tpu.memory_space<vmem>>, vector<1x12x128xf32>
        %62 = vector.shape_cast %61 : vector<1x12x128xf32> to vector<12x128xf32>
        %c36 = arith.constant 36 : index
        %c0_21 = arith.constant 0 : index
        %63 = vector.load %arg6[%c36, %c0_21] : memref<48x128xf32, #tpu.memory_space<vmem>>, vector<12x128xf32>
        tpu.vector_store %arg6[%c36, %c0_21], %62 {strides = array<i32>} : memref<48x128xf32, #tpu.memory_space<vmem>>, vector<12x128xf32>,
      } else {
      }
    } else {
    }
    %c1_i32 = arith.constant 1 : i32
    %5 = arith.cmpi eq, %arg0, %c1_i32 : i32
    %6 = arith.extui %5 : i1 to i32
    %c0_i32_1 = arith.constant 0 : i32
    %7 = arith.cmpi ne, %6, %c0_i32_1 : i32
    scf.if %7 {
      %c0_9 = arith.constant 0 : index
      %c0_10 = arith.constant 0 : index
      %c0_11 = arith.constant 0 : index
      %49 = vector.load %arg4[%c0_9, %c0_10, %c0_11] : memref<1x16x128xf32, #tpu.memory_space<vmem>>, vector<1x12x128xf32>
      %50 = vector.shape_cast %49 : vector<1x12x128xf32> to vector<12x128xf32>
      %c0_12 = arith.constant 0 : index
      %c0_13 = arith.constant 0 : index
      %51 = vector.load %arg6[%c0_12, %c0_13] : memref<48x128xf32, #tpu.memory_space<vmem>>, vector<12x128xf32>
      tpu.vector_store %arg6[%c0_12, %c0_13], %50 {strides = array<i32>} : memref<48x128xf32, #tpu.memory_space<vmem>>, vector<12x128xf32>,
      %c12_i32 = arith.constant 12 : i32
      %52 = arith.cmpi sgt, %1, %c12_i32 : i32
      %53 = arith.extui %52 : i1 to i32
      %c0_i32_14 = arith.constant 0 : i32
      %54 = arith.cmpi ne, %53, %c0_i32_14 : i32
      scf.if %54 {
        %c0_17 = arith.constant 0 : index
        %c0_18 = arith.constant 0 : index
        %c0_19 = arith.constant 0 : index
        %61 = vector.load %arg4[%c0_17, %c0_18, %c0_19] : memref<1x16x128xf32, #tpu.memory_space<vmem>>, vector<1x12x128xf32>
        %62 = vector.shape_cast %61 : vector<1x12x128xf32> to vector<12x128xf32>
        %c12 = arith.constant 12 : index
        %c0_20 = arith.constant 0 : index
        %63 = vector.load %arg6[%c12, %c0_20] : memref<48x128xf32, #tpu.memory_space<vmem>>, vector<12x128xf32>
        tpu.vector_store %arg6[%c12, %c0_20], %62 {strides = array<i32>} : memref<48x128xf32, #tpu.memory_space<vmem>>, vector<12x128xf32>,
      } else {
      }
      %c24_i32 = arith.constant 24 : i32
      %55 = arith.cmpi sgt, %1, %c24_i32 : i32
      %56 = arith.extui %55 : i1 to i32
      %c0_i32_15 = arith.constant 0 : i32
      %57 = arith.cmpi ne, %56, %c0_i32_15 : i32
      scf.if %57 {
        %c0_17 = arith.constant 0 : index
        %c0_18 = arith.constant 0 : index
        %c0_19 = arith.constant 0 : index
        %61 = vector.load %arg4[%c0_17, %c0_18, %c0_19] : memref<1x16x128xf32, #tpu.memory_space<vmem>>, vector<1x12x128xf32>
        %62 = vector.shape_cast %61 : vector<1x12x128xf32> to vector<12x128xf32>
        %c24 = arith.constant 24 : index
        %c0_20 = arith.constant 0 : index
        %63 = vector.load %arg6[%c24, %c0_20] : memref<48x128xf32, #tpu.memory_space<vmem>>, vector<12x128xf32>
        tpu.vector_store %arg6[%c24, %c0_20], %62 {strides = array<i32>} : memref<48x128xf32, #tpu.memory_space<vmem>>, vector<12x128xf32>,
      } else {
      }
      %c36_i32 = arith.constant 36 : i32
      %58 = arith.cmpi sgt, %1, %c36_i32 : i32
      %59 = arith.extui %58 : i1 to i32
      %c0_i32_16 = arith.constant 0 : i32
      %60 = arith.cmpi ne, %59, %c0_i32_16 : i32
      scf.if %60 {
        %c0_17 = arith.constant 0 : index
        %c0_18 = arith.constant 0 : index
        %c0_19 = arith.constant 0 : index
        %61 = vector.load %arg4[%c0_17, %c0_18, %c0_19] : memref<1x16x128xf32, #tpu.memory_space<vmem>>, vector<1x12x128xf32>
        %62 = vector.shape_cast %61 : vector<1x12x128xf32> to vector<12x128xf32>
        %c36 = arith.constant 36 : index
        %c0_20 = arith.constant 0 : index
        %63 = vector.load %arg6[%c36, %c0_20] : memref<48x128xf32, #tpu.memory_space<vmem>>, vector<12x128xf32>
        tpu.vector_store %arg6[%c36, %c0_20], %62 {strides = array<i32>} : memref<48x128xf32, #tpu.memory_space<vmem>>, vector<12x128xf32>,
      } else {
      }
    } else {
    }
    %c4_i32 = arith.constant 4 : i32
    %8 = arith.muli %arg1, %c4_i32 : i32
    %9 = arith.index_cast %8 : i32 to index
    %10 = memref.load %arg2[%9] : memref<8xi32, #tpu.memory_space<smem>>
    %11 = arith.index_cast %10 : i32 to index
    %c0 = arith.constant 0 : index
    %12 = vector.load %arg6[%11, %c0] : memref<48x128xf32, #tpu.memory_space<vmem>>, vector<16x128xf32>
    %c1_i32_2 = arith.constant 1 : i32
    %13 = arith.addi %8, %c1_i32_2 : i32
    %14 = arith.index_cast %13 : i32 to index
    %15 = memref.load %arg2[%14] : memref<8xi32, #tpu.memory_space<smem>>
    %16 = arith.index_cast %15 : i32 to index
    %c0_3 = arith.constant 0 : index
    %17 = vector.load %arg6[%16, %c0_3] : memref<48x128xf32, #tpu.memory_space<vmem>>, vector<16x128xf32>
    %18 = tpu.iota {dimensions = array<i32: 1>} : vector<1x128xi32>
    %c32_i32 = arith.constant 32 : i32
    %19 = vector.broadcast %c32_i32 : i32 to vector<1x128xi32>
    %20 = arith.cmpi sge, %18, %19 : vector<1x128xi32>
    %21 = vector.shape_cast %20 : vector<1x128xi1> to vector<1x128xi1>
    %22 = vector.broadcast %21 : vector<1x128xi1> to vector<16x128xi1>
    %23 = arith.select %22, %17, %12 : vector<16x128xi1>, vector<16x128xf32>
    %c2_i32 = arith.constant 2 : i32
    %24 = arith.addi %8, %c2_i32 : i32
    %25 = arith.index_cast %24 : i32 to index
    %26 = memref.load %arg2[%25] : memref<8xi32, #tpu.memory_space<smem>>
    %27 = arith.index_cast %26 : i32 to index
    %c0_4 = arith.constant 0 : index
    %28 = vector.load %arg6[%27, %c0_4] : memref<48x128xf32, #tpu.memory_space<vmem>>, vector<16x128xf32>
    %29 = tpu.iota {dimensions = array<i32: 1>} : vector<1x128xi32>
    %c64_i32 = arith.constant 64 : i32
    %30 = vector.broadcast %c64_i32 : i32 to vector<1x128xi32>
    %31 = arith.cmpi sge, %29, %30 : vector<1x128xi32>
    %32 = vector.shape_cast %31 : vector<1x128xi1> to vector<1x128xi1>
    %33 = vector.broadcast %32 : vector<1x128xi1> to vector<16x128xi1>
    %34 = arith.select %33, %28, %23 : vector<16x128xi1>, vector<16x128xf32>
    %c3_i32 = arith.constant 3 : i32
    %35 = arith.addi %8, %c3_i32 : i32
    %36 = arith.index_cast %35 : i32 to index
    %37 = memref.load %arg2[%36] : memref<8xi32, #tpu.memory_space<smem>>
    %38 = arith.index_cast %37 : i32 to index
    %c0_5 = arith.constant 0 : index
    %39 = vector.load %arg6[%38, %c0_5] : memref<48x128xf32, #tpu.memory_space<vmem>>, vector<16x128xf32>
    %40 = tpu.iota {dimensions = array<i32: 1>} : vector<1x128xi32>
    %c96_i32 = arith.constant 96 : i32
    %41 = vector.broadcast %c96_i32 : i32 to vector<1x128xi32>
    %42 = arith.cmpi sge, %40, %41 : vector<1x128xi32>
    %43 = vector.shape_cast %42 : vector<1x128xi1> to vector<1x128xi1>
    %44 = vector.broadcast %43 : vector<1x128xi1> to vector<16x128xi1>
    %45 = arith.select %44, %39, %34 : vector<16x128xi1>, vector<16x128xf32>
    %c0_6 = arith.constant 0 : index
    %c0_7 = arith.constant 0 : index
    %c0_8 = arith.constant 0 : index
    %46 = vector.load %arg5[%c0_6, %c0_7, %c0_8] : memref<1x16x128xf32, #tpu.memory_space<vmem>>, vector<1x16x128xf32>
    %47 = vector.shape_cast %46 : vector<1x16x128xf32> to vector<16x128xf32>
    %48 = vector.shape_cast %45 : vector<16x128xf32> to vector<1x16x128xf32>
    tpu.vector_store %arg5[%c0_6, %c0_7, %c0_8], %48 {strides = array<i32>} : memref<1x16x128xf32, #tpu.memory_space<vmem>>, vector<1x16x128xf32>,
    return
  }
  func.func @transform_0(%arg0: i32, %arg1: i32, %arg2: memref<8xi32, #tpu.memory_space<smem>>, %arg3: memref<2xi32, #tpu.memory_space<smem>>) -> (i32, i32, i32) {
    %c0_i32 = arith.constant 0 : i32
    %c0_i32_0 = arith.constant 0 : i32
    return %arg0, %c0_i32, %arg1 : i32, i32, i32
  }
  func.func @transform_1(%arg0: i32, %arg1: i32, %arg2: memref<8xi32, #tpu.memory_space<smem>>, %arg3: memref<2xi32, #tpu.memory_space<smem>>) -> (i32, i32, i32) {
    %c0_i32 = arith.constant 0 : i32
    %c0_i32_0 = arith.constant 0 : i32
    return %arg0, %c0_i32, %arg1 : i32, i32, i32
  }
}

</mosaic_0001>

<llo_original>
// kernel: tpu_custom_call.1
$region0: #{tpu_custom_call.1}
  #allocation0 [shape = 'u32[]', space=smem, size = 0x4, offset = 0x4, fixed_abs, tag = 'smem constant byte address 0x4 - core index']
  #allocation1 [shape = 'u32[144,128]{1,0:T(1,128)}', space=vmem, size = 0x12000, scoped, tag = 'internal scratch']
  #allocation2 [shape = 'f32[48,128]{1,0:T(8,128)}', space=vmem, size = 0x6000, scoped, tag = 'scratch operand']
  #allocation3 [shape = 's32[1]{0}', space=sflag, size = 0x4, scoped, tag = 'scoped memory for tpu_custom_call.1']
  #allocation4 [shape = 'u8[512]{0}', space=smem, size = 0x200, scoped, tag = 'prefetched SMEM operand 0']
  #allocation5 [shape = 'u8[512]{0}', space=smem, size = 0x200, scoped, tag = 'prefetched SMEM operand 1']
  %s0 = inlined_call_operand.hbm [shape: s32[8], index: 0, kind: input, shape index: {}]
  %s1 = inlined_call_operand.vmem [shape: s32[2], index: 1, kind: input, shape index: {}]
  %s2 = inlined_call_operand.hbm [shape: f32[2,16,256], index: 2, kind: input, shape index: {}]
  %s3 = inlined_call_operand.hbm [shape: f32[2,16,256], index: 3, kind: output, shape index: {}]
  %s4 = sld [smem:[#allocation0]]
  $region73: #{tpu_custom_call.1} parent=0
    _
  %s6 = ssub.s32 1, %s4
  %s7 = scalar_select 0, %s6, %s4
  %9 = dma.hbm_to_smem %s0, 16, [#allocation4], [#allocation3]
  %s10 = sshll.u32 %s1, 4
  %s11 = int_to_ptr.vmem [resolvable:$true] %s10
  %13 = dma.vmem_to_smem %s11, 16, [#allocation5], [#allocation3]
  %14 = dma.done [#allocation3], 32
  %15 = sfence
  $region1: #{tpu_custom_call.1} parent=0
    #allocation6 [shape = 'u8[16384]{0}', space=vmem, size = 0x4000, scoped, tag = 'input window, operand 2']
    #allocation7 [shape = 's32[2]{0}', space=sflag, size = 0x8, scoped, tag = 'scoped memory for tpu_custom_call.1']
    #allocation8 [shape = 's32[2]{0}', space=sflag, size = 0x8, scoped, tag = 'scoped memory for tpu_custom_call.1']
    #allocation9 [shape = 'u8[16384]{0}', space=vmem, size = 0x4000, scoped, tag = 'output window, operand 0']
    %16 = vsyncpa [#allocation7], 0
    %s17 = scalar_lea.sflag [#allocation7], 1
    %18 = vsyncpa %s17, 0
    %19 = vsyncpa [#allocation8], 0
    %s20 = scalar_lea.sflag [#allocation8], 1
    %21 = vsyncpa %s20, 0
    loop: start=0, step=1, limit=6
    $region2: #{tpu_custom_call.1} parent=1 // loop_pre_header
      _
    $region3: #{tpu_custom_call.1} parent=1 // loop_header
      %s23 = sphi 0, %s27
      %p24 = scmp.ge.s32.totalorder %s23, 6
      %s30 = sphi 0, %s42
      %s31 = sphi 0, %s38
      %s32 = sphi 0, %s30
      %s33 = sphi 0, %s31
      %s34 = sphi 0, %s32
      %s35 = sphi 0, %s33
      %s47 = sphi 0, %s49
      %s50 = sphi 0, %s47
      %s51 = sphi 0, %s50
      %s67 = sphi 0, %s51
      %s75 = sphi 0, %s77
      %s78 = sphi 0, %s75
      %s79 = sphi 0, %s78
      %s95 = sphi 0, %s79
    $region4: #{tpu_custom_call.1} parent=1 // loop_header_branch
      %26 = sbr.rel (%p24) target = $region8
    $region5: #{tpu_custom_call.1} parent=1 // loop_body
      %s28 = ssub.s32 %s23, 1
      %s29 = ssub.s32 %s23, 2
      %s36 = sadd.s32 1, %s31
      %p37 = scmp.ge.s32.totalorder %s36, 2
      %s38 = scalar_select %p37, 0, %s36
      %s39 = sadd.s32 1, %s30
      %s40 = scalar_select %p37, %s39, %s30
      %p41 = scmp.ge.s32.totalorder %s40, 2
      %s42 = scalar_select %p41, 0, %s40
      %s43 = ssub.s32 %s30, %s42
      %s44 = ssub.s32 %s31, %s38
      %s45 = sor.u32 %s43, %s44
      %p46 = scmp.eq.s32.totalorder %s45, 0
      %s48 = sadd.s32 %s47, 1
      %s49 = scalar_select %p46, %s47, %s48
      %p52 = pneg %p46
      %p53 = scmp.eq.s32.totalorder %s23, 3
      %p54 = por %p52, %p53
      %p55 = scmp.ne.s32.totalorder %s47, %s50
      %p56 = scmp.eq.s32.totalorder %s23, 0
      %p57 = por %p55, %p56
      %p58 = scmp.ne.s32.totalorder %s47, %s50
      %p59 = scmp.eq.s32.totalorder %s28, 3
      %p60 = por %p58, %p59
      %p61 = scmp.ne.s32.totalorder %s50, %s51
      %p62 = scmp.eq.s32.totalorder %s28, 0
      %p63 = por %p61, %p62
      %p64 = scmp.ne.s32.totalorder %s50, %s51
      %p65 = scmp.eq.s32.totalorder %s29, 3
      %p66 = por %p64, %p65
      %p68 = scmp.ne.s32.totalorder %s51, %s67
      %p69 = scmp.eq.s32.totalorder %s29, 0
      %p70 = por %p68, %p69
      %s71 = ssub.s32 %s30, %s42
      %s72 = ssub.s32 %s31, %s38
      %s73 = sor.u32 %s71, %s72
      %p74 = scmp.eq.s32.totalorder %s73, 0
      %s76 = sadd.s32 %s75, 1
      %s77 = scalar_select %p74, %s75, %s76
      %p80 = pneg %p74
      %p81 = scmp.eq.s32.totalorder %s23, 3
      %p82 = por %p80, %p81
      %p83 = scmp.ne.s32.totalorder %s75, %s78
      %p84 = scmp.eq.s32.totalorder %s23, 0
      %p85 = por %p83, %p84
      %p86 = scmp.ne.s32.totalorder %s75, %s78
      %p87 = scmp.eq.s32.totalorder %s28, 3
      %p88 = por %p86, %p87
      %p89 = scmp.ne.s32.totalorder %s78, %s79
      %p90 = scmp.eq.s32.totalorder %s28, 0
      %p91 = por %p89, %p90
      %p92 = scmp.ne.s32.totalorder %s78, %s79
      %p93 = scmp.eq.s32.totalorder %s29, 3
      %p94 = por %p92, %p93
      %p96 = scmp.ne.s32.totalorder %s79, %s95
      %p97 = scmp.eq.s32.totalorder %s29, 0
      %p98 = por %p96, %p97
      %p99 = scmp.le.s32.totalorder 1, %s23
      %p100 = scmp.lt.s32.totalorder %s23, 5
      %p101 = pnand %p99, %p100
      %p102 = pneg %p101
      // Predicated region
      $region9: #{tpu_custom_call.1} parent=5 // pred_check
        _
      $region10: #{tpu_custom_call.1} parent=5 // pred_check_branch
        %104 = sbr.rel (%p101) target = $region12
      $region11: #{tpu_custom_call.1} parent=5 // pred_region
        %s105 = ssub.s32 %s23, 1
      $region12: #{tpu_custom_call.1} parent=5 // pred_fallthru
        _
      %p106 = scmp.lt.s32.totalorder %s23, 4
      // Predicated region
      $region13: #{tpu_custom_call.1} parent=5 // pred_check
        %p107 = pneg %p106
      $region14: #{tpu_custom_call.1} parent=5 // pred_check_branch
        %109 = sbr.rel (%p107) target = $region16
      $region15: #{tpu_custom_call.1} parent=5 // pred_region
        // Predicated region
        $region17: #{tpu_custom_call.1} parent=15 // pred_check
          %p110 = pneg %p57
        $region18: #{tpu_custom_call.1} parent=15 // pred_check_branch
          %112 = sbr.rel (%p110) target = $region20
        $region19: #{tpu_custom_call.1} parent=15 // pred_region
          %s113 = sand.u32 %s47, 1
          %s114 = scalar_lea.sflag [#allocation7], %s113
          %s115 = sand.u32 %s47, 1
          %s116 = smul.addr %s115, 16
          %s117 = scalar_lea.vmem [#allocation6], %s116
          %s119 = ssub.s32 256, 256
          %120 = vsyncadd %s114, %s119
          %s121 = smul.addr %s30, 4
          %s122 = sadd.s32 %s31, %s121
          %s123 = smul.addr %s122, 128
          %s124 = scalar_lea.hbm %s2, %s123
          %s125 = sshll.u32 %s117, 4
          %s126 = int_to_ptr.vmem [resolvable:$true] %s125
          %131 = dma.hbm_to_vmem [thread:$0]  %s124, 256, %s126, %s114, 256, 128, 8
        $region20: #{tpu_custom_call.1} parent=15 // pred_fallthru
          _
      $region16: #{tpu_custom_call.1} parent=5 // pred_fallthru
        _
      %p132 = scmp.le.s32.totalorder 1, %s23
      %p133 = scmp.lt.s32.totalorder %s23, 5
      %p134 = pnand %p132, %p133
      %p135 = pneg %p134
      // Predicated region
      $region21: #{tpu_custom_call.1} parent=5 // pred_check
        _
      $region22: #{tpu_custom_call.1} parent=5 // pred_check_branch
        %137 = sbr.rel (%p134) target = $region24
      $region23: #{tpu_custom_call.1} parent=5 // pred_region
        %s138 = ssub.s32 %s23, 1
        %s139 = sand.u32 %s50, 1
        %s140 = scalar_lea.sflag [#allocation7], %s139
        %s141 = sand.u32 %s50, 1
        %s142 = smul.addr %s141, 16
        %s143 = scalar_lea.vmem [#allocation6], %s142
        // Predicated region
        $region25: #{tpu_custom_call.1} parent=23 // pred_check
          %p144 = pneg %p63
        $region26: #{tpu_custom_call.1} parent=23 // pred_check_branch
          %146 = sbr.rel (%p144) target = $region28
        $region27: #{tpu_custom_call.1} parent=23 // pred_region
          %147 = dma.done %s140, 256
        $region28: #{tpu_custom_call.1} parent=23 // pred_fallthru
          _
        %s148 = sand.u32 %s50, 1
        %s149 = scalar_lea.sflag [#allocation7], %s148
        %s150 = sand.u32 %s50, 1
        %s151 = smul.addr %s150, 16
        %s152 = scalar_lea.vmem [#allocation6], %s151
        %p153 = pneg %p63
        %p154 = pneg %p60
        %p155 = pneg %p91
        %p156 = pneg %p88
        %s157 = sand.u32 %s78, 1
        %s158 = scalar_lea.sflag [#allocation8], %s157
        %s159 = sand.u32 %s78, 1
        %s160 = smul.addr %s159, 16
        %s161 = scalar_lea.vmem [#allocation9], %s160
        %s162 = sld [smem:[#allocation5 + %s33]]
        %p163 = scmp.eq.s32.totalorder %s32, 0
        // Predicated region
        $region29: #{tpu_custom_call.1} parent=23 // pred_check
          %p164 = pneg %p163
        $region30: #{tpu_custom_call.1} parent=23 // pred_check_branch
          %166 = sbr.rel (%p164) target = $region32
        $region31: #{tpu_custom_call.1} parent=23 // pred_region
          %v167 = vld [vmem:[%s143] sm:$0xff]
          %v168 = vld [vmem:[%s143 + $0x8] sm:$0xff]
          %169 = vst [vmem:[#allocation2] sm:$0xff] %v167
          %170 = vst [vmem:[#allocation2 + $0x8] sm:$0xff] %v168
          %p171 = scmp.gt.s32.totalorder %s162, 16
          // Predicated region
          $region33: #{tpu_custom_call.1} parent=31 // pred_check
            %p172 = pneg %p171
          $region34: #{tpu_custom_call.1} parent=31 // pred_check_branch
            %174 = sbr.rel (%p172) target = $region36
          $region35: #{tpu_custom_call.1} parent=31 // pred_region
            %v175 = vld [vmem:[%s143] sm:$0xff]
            %v176 = vld [vmem:[%s143 + $0x8] sm:$0xff]
            %177 = vst [vmem:[#allocation2 + $0x10] sm:$0xff] %v175
            %178 = vst [vmem:[#allocation2 + $0x18] sm:$0xff] %v176
          $region36: #{tpu_custom_call.1} parent=31 // pred_fallthru
            _
          %p179 = scmp.gt.s32.totalorder %s162, 32
          // Predicated region
          $region37: #{tpu_custom_call.1} parent=31 // pred_check
            %p180 = pneg %p179
          $region38: #{tpu_custom_call.1} parent=31 // pred_check_branch
            %182 = sbr.rel (%p180) target = $region40
          $region39: #{tpu_custom_call.1} parent=31 // pred_region
            %v183 = vld [vmem:[%s143] sm:$0xf]
            %184 = vst [vmem:[#allocation2 + $0x20] sm:$0xf] %v183
          $region40: #{tpu_custom_call.1} parent=31 // pred_fallthru
            _
          %p185 = scmp.gt.s32.totalorder %s162, 36
          // Predicated region
          $region41: #{tpu_custom_call.1} parent=31 // pred_check
            %p186 = pneg %p185
          $region42: #{tpu_custom_call.1} parent=31 // pred_check_branch
            %188 = sbr.rel (%p186) target = $region44
          $region43: #{tpu_custom_call.1} parent=31 // pred_region
            %v189 = vld [vmem:[%s143] sm:$0xff]
            %v190 = vld [vmem:[%s143 + $0x8] sm:$0xf]
            %191 = vst [vmem:[#allocation2 + $0x24] sm:$0xff] %v189
            %192 = vst [vmem:[#allocation2 + $0x2c] sm:$0xf] %v190
          $region44: #{tpu_custom_call.1} parent=31 // pred_fallthru
            _
        $region32: #{tpu_custom_call.1} parent=23 // pred_fallthru
          _
        %p193 = scmp.eq.s32.totalorder %s32, 1
        // Predicated region
        $region45: #{tpu_custom_call.1} parent=23 // pred_check
          %p194 = pneg %p193
        $region46: #{tpu_custom_call.1} parent=23 // pred_check_branch
          %196 = sbr.rel (%p194) target = $region48
        $region47: #{tpu_custom_call.1} parent=23 // pred_region
          %v197 = vld [vmem:[%s143] sm:$0xff]
          %v198 = vld [vmem:[%s143 + $0x8] sm:$0xf]
          %199 = vst [vmem:[#allocation2] sm:$0xff] %v197
          %200 = vst [vmem:[#allocation2 + $0x8] sm:$0xf] %v198
          %p201 = scmp.gt.s32.totalorder %s162, 12
          // Predicated region
          $region49: #{tpu_custom_call.1} parent=47 // pred_check
            %p202 = pneg %p201
          $region50: #{tpu_custom_call.1} parent=47 // pred_check_branch
            %204 = sbr.rel (%p202) target = $region52
          $region51: #{tpu_custom_call.1} parent=47 // pred_region
            %v205 = vld [vmem:[%s143] sm:$0xff]
            %v206 = vld [vmem:[%s143 + $0x8] sm:$0xf]
            %207 = vst [vmem:[#allocation2 + $0xc] sm:$0xff] %v205
            %208 = vst [vmem:[#allocation2 + $0x14] sm:$0xf] %v206
          $region52: #{tpu_custom_call.1} parent=47 // pred_fallthru
            _
          %p209 = scmp.gt.s32.totalorder %s162, 24
          // Predicated region
          $region53: #{tpu_custom_call.1} parent=47 // pred_check
            %p210 = pneg %p209
          $region54: #{tpu_custom_call.1} parent=47 // pred_check_branch
            %212 = sbr.rel (%p210) target = $region56
          $region55: #{tpu_custom_call.1} parent=47 // pred_region
            %v213 = vld [vmem:[%s143] sm:$0xff]
            %v214 = vld [vmem:[%s143 + $0x8] sm:$0xf]
            %215 = vst [vmem:[#allocation2 + $0x18] sm:$0xff] %v213
            %216 = vst [vmem:[#allocation2 + $0x20] sm:$0xf] %v214
          $region56: #{tpu_custom_call.1} parent=47 // pred_fallthru
            _
          %p217 = scmp.gt.s32.totalorder %s162, 36
          // Predicated region
          $region57: #{tpu_custom_call.1} parent=47 // pred_check
            %p218 = pneg %p217
          $region58: #{tpu_custom_call.1} parent=47 // pred_check_branch
            %220 = sbr.rel (%p218) target = $region60
          $region59: #{tpu_custom_call.1} parent=47 // pred_region
            %v221 = vld [vmem:[%s143] sm:$0xff]
            %v222 = vld [vmem:[%s143 + $0x8] sm:$0xf]
            %223 = vst [vmem:[#allocation2 + $0x24] sm:$0xff] %v221
            %224 = vst [vmem:[#allocation2 + $0x2c] sm:$0xf] %v222
          $region60: #{tpu_custom_call.1} parent=47 // pred_fallthru
            _
        $region48: #{tpu_custom_call.1} parent=23 // pred_fallthru
          _
        %s225 = smul.u32 %s33, 4
        %s226 = sld [smem:[#allocation4 + %s225]]
        %s227 = scalar_lea.vmem [#allocation2], %s226
        %v228 = vld [vmem:[%s227] sm:$0xff]
        %v229 = vld [vmem:[%s227 + $0x8] sm:$0xff]
        %s230 = sadd.s32 %s225, 1
        %s231 = sld [smem:[#allocation4 + %s230]]
        %s232 = scalar_lea.vmem [#allocation2], %s231
        %v233 = vld [vmem:[%s232] sm:$0xff]
        %v234 = vld [vmem:[%s232 + $0x8] sm:$0xff]
        %v235 = vlaneseq
        %v236 = vand.u32 %v235, 127
        %vm237 = vcmp.ge.s32.totalorder %v236, 32
        %v238 = vsel %vm237, 1, 0
        %vm239 = vcmp.eq.s32.totalorder %v238, 1
        %v240 = vsel %vm239, %v233, %v228
        %v241 = vsel %vm239, %v234, %v229
        %s242 = sadd.s32 %s225, 2
        %s243 = sld [smem:[#allocation4 + %s242]]
        %s244 = scalar_lea.vmem [#allocation2], %s243
        %v245 = vld [vmem:[%s244] sm:$0xff]
        %v246 = vld [vmem:[%s244 + $0x8] sm:$0xff]
        %vm247 = vcmp.ge.s32.totalorder %v236, 64
        %v248 = vsel %vm247, 1, 0
        %vm249 = vcmp.eq.s32.totalorder %v248, 1
        %v250 = vsel %vm249, %v245, %v240
        %v251 = vsel %vm249, %v246, %v241
        %s252 = sadd.s32 %s225, 3
        %s253 = sld [smem:[#allocation4 + %s252]]
        %s254 = scalar_lea.vmem [#allocation2], %s253
        %v255 = vld [vmem:[%s254] sm:$0xff]
        %v256 = vld [vmem:[%s254 + $0x8] sm:$0xff]
        %vm257 = vcmp.ge.s32.totalorder %v236, 96
        %v258 = vsel %vm257, 1, 0
        %vm259 = vcmp.eq.s32.totalorder %v258, 1
        %v260 = vsel %vm259, %v255, %v250
        %v261 = vsel %vm259, %v256, %v251
        %262 = vst [vmem:[%s161] sm:$0xff] %v260
        %263 = vst [vmem:[%s161 + $0x8] sm:$0xff] %v261
        %s264 = sand.u32 %s78, 1
        %s265 = scalar_lea.sflag [#allocation8], %s264
        %s266 = sand.u32 %s78, 1
        %s267 = smul.addr %s266, 16
        %s268 = scalar_lea.vmem [#allocation9], %s267
        // Predicated region
        $region61: #{tpu_custom_call.1} parent=23 // pred_check
          %p269 = pneg %p88
        $region62: #{tpu_custom_call.1} parent=23 // pred_check_branch
          %271 = sbr.rel (%p269) target = $region64
        $region63: #{tpu_custom_call.1} parent=23 // pred_region
          %s273 = ssub.s32 256, 256
          %274 = vsyncadd %s265, %s273
          %s275 = smul.addr %s32, 4
          %s276 = sadd.s32 %s33, %s275
          %s277 = smul.addr %s276, 128
          %s278 = scalar_lea.hbm %s3, %s277
          %s279 = sshll.u32 %s268, 4
          %s280 = int_to_ptr.vmem [resolvable:$true] %s279
          %285 = dma.vmem_to_hbm [thread:$0]  %s280, 256, %s278, %s265, 128, 256, 8
        $region64: #{tpu_custom_call.1} parent=23 // pred_fallthru
          _
      $region24: #{tpu_custom_call.1} parent=5 // pred_fallthru
        _
      %p286 = scmp.le.s32.totalorder 2, %s23
      // Predicated region
      $region65: #{tpu_custom_call.1} parent=5 // pred_check
        %p287 = pneg %p286
      $region66: #{tpu_custom_call.1} parent=5 // pred_check_branch
        %289 = sbr.rel (%p287) target = $region68
      $region67: #{tpu_custom_call.1} parent=5 // pred_region
        %s290 = ssub.s32 %s23, 2
        // Predicated region
        $region69: #{tpu_custom_call.1} parent=67 // pred_check
          %p291 = pneg %p94
        $region70: #{tpu_custom_call.1} parent=67 // pred_check_branch
          %293 = sbr.rel (%p291) target = $region72
        $region71: #{tpu_custom_call.1} parent=67 // pred_region
          %s294 = sand.u32 %s79, 1
          %s295 = scalar_lea.sflag [#allocation8], %s294
          %s296 = sand.u32 %s79, 1
          %s297 = smul.addr %s296, 16
          %s298 = scalar_lea.vmem [#allocation9], %s297
          %299 = dma.done %s295, 256
        $region72: #{tpu_custom_call.1} parent=67 // pred_fallthru
          _
      $region68: #{tpu_custom_call.1} parent=5 // pred_fallthru
        _
    $region6: #{tpu_custom_call.1} parent=1 // loop_footer
      %s27 = sadd.s32 1, %s23
    $region7: #{tpu_custom_call.1} parent=1 // loop_footer_branch
      %22 = sbr.rel target = $region3
    $region8: #{tpu_custom_call.1} parent=1 // loop_exit
      _
    %300 = vsyncpa [#allocation7], 1
    %s301 = scalar_lea.sflag [#allocation7], 1
    %302 = vsyncpa %s301, 1
    %303 = vsyncpa [#allocation8], 1
    %s304 = scalar_lea.sflag [#allocation8], 1
    %305 = vsyncpa %s304, 1

</llo_original>
